<compile_context>
chip_gen: v5e
topology: v5e:2x2
jax: 0.10.0
libtpu: 0.0.40
codegen_flags: <defaults>
</compile_context>

<pallas_src>
import functools

import jax
import jax.numpy as jnp
from jax.experimental import pallas as pl
from jax.experimental.pallas import tpu as pltpu


def mlp_kernel(x_ref, w1_ref, b1_ref, w2_ref, b2_ref, w3_ref, b3_ref,
               w4_ref, b4_ref, o_ref, *, lane_dense):
    # f32 tile -> bf16 on the VPU (avoids a separate wrapper-side HBM cast pass).
    x = x_ref[...].astype(jnp.bfloat16)

    # fc1 + relu   (TB, D)bf16 @ (D, 256)bf16 -> (TB, 256) f32
    h1 = jnp.dot(x, w1_ref[...], preferred_element_type=jnp.float32)
    h1 = jnp.maximum(h1 + b1_ref[...], 0.0)
    # dropout (eval mode) -> identity

    # fc2 + relu   (TB, 256) @ (256, 128) -> (TB, 128)
    h2 = jnp.dot(h1.astype(jnp.bfloat16), w2_ref[...],
                 preferred_element_type=jnp.float32)
    h2 = jnp.maximum(h2 + b2_ref[...], 0.0)
    # dropout (eval mode) -> identity

    # fc3 + relu   (TB, 128) @ (128, 64) -> (TB, 64)
    h3 = jnp.dot(h2.astype(jnp.bfloat16), w3_ref[...],
                 preferred_element_type=jnp.float32)
    h3 = jnp.maximum(h3 + b3_ref[...], 0.0)

    # fc4 on VPU + XLU lane-reduce (an N=1 MXU matmul wastes a push/drain):
    # (TB, 64) * (1, 64) -> sum over lanes -> (TB, 1)
    out_col = jnp.sum(h3 * w4_ref[...], axis=-1, keepdims=True) + b4_ref[...]

    if lane_dense:
        # Lane-dense store: (TB, 1) column -> (1, TB) row (XLU transpose; its
        # slot is otherwise idle), so the writeback is unmasked/contiguous.
        o_ref[...] = out_col.T.astype(o_ref.dtype)
    else:
        o_ref[...] = out_col.astype(o_ref.dtype)


def _round_up(n, m):
    return ((n + m - 1) // m) * m


def _vmem_estimate_bytes(tb_eff, d):
    x_bufs = 2 * tb_eff * d * 4                       # double-buffered f32 x tile
    out_bufs = 2 * tb_eff * 4                         # double-buffered output row
    inter = tb_eff * (256 + 128 + 64) * 4             # live f32 intermediates
    weights = (d * 256 + 256 * 128 + 128 * 64) * 2    # bf16 pinned weights
    biases = (256 + 128 + 64 + 64 + 1) * 4
    return x_bufs + out_bufs + inter + weights + biases


def _batch_axis_semantics(num_tiles):
    """CORE_PARALLEL on multi-TensorCore chips (v7x) so the batch grid axis is
    genuinely sharded across cores; PARALLEL elsewhere (single-TC: no-op)."""
    try:
        kind = jax.devices()[0].device_kind.lower()
        if num_tiles > 1 and ("v7" in kind or "7x" in kind):
            return pltpu.CORE_PARALLEL
    except Exception:
        pass
    return pltpu.PARALLEL


def house_price_predictor(x, params, *, tb=2048, lane_dense_out=True):
    """x: (B, input_dim) float32.  params: dict, weights stored (in, out)."""
    B, D = x.shape

    # Only pad to the 8-sublane multiple (<= 7 rows), never to a full tile.
    B8 = _round_up(B, 8)
    if B8 != B:
        x = jnp.pad(x, ((0, B8 - B), (0, 0)))

    # Tile selection: single tile for small batches; otherwise a multiple of
    # 128 so the lane-dense (1, TB) output block satisfies the lane rule.
    if B8 <= tb:
        tb_eff = B8
    else:
        tb_eff = min(_round_up(tb, 128), B8)
    num_tiles = pl.cdiv(B8, tb_eff)

    # MXU operands in bf16 (tiny one-off casts); biases / fc4 row stay f32 and
    # accumulation stays f32 via preferred_element_type.
    w1 = params["w1"].astype(jnp.bfloat16)
    w2 = params["w2"].astype(jnp.bfloat16)
    w3 = params["w3"].astype(jnp.bfloat16)
    w4_row = params["w4"].reshape(1, -1).astype(jnp.float32)   # (1, 64)
    b1 = params["b1"].astype(jnp.float32)
    b2 = params["b2"].astype(jnp.float32)
    b3 = params["b3"].astype(jnp.float32)
    b4 = params["b4"].reshape(1, 1).astype(jnp.float32)

    pinned = lambda a: pl.BlockSpec(a.shape, lambda i: (0,) * a.ndim)

    if lane_dense_out:
        out_shape = jax.ShapeDtypeStruct((1, num_tiles * tb_eff), jnp.float32)
        out_spec = pl.BlockSpec((1, tb_eff), lambda i: (0, i))
    else:
        out_shape = jax.ShapeDtypeStruct((num_tiles * tb_eff, 1), jnp.float32)
        out_spec = pl.BlockSpec((tb_eff, 1), lambda i: (i, 0))

    # Raise the scoped-VMEM limit only when a big tile actually needs it; the
    # 32 MiB cap is <= the default/physical budget on every generation.
    est = _vmem_estimate_bytes(tb_eff, D)
    vmem_limit = int(min(32 * 1024 * 1024, 2 * est)) if 2 * est > 16 * 1024 * 1024 else None

    cost = pl.CostEstimate(
        flops=2 * B8 * (D * 256 + 256 * 128 + 128 * 64 + 64),
        transcendentals=0,
        bytes_accessed=(B8 * D * 4 + B8 * 4
                        + (D * 256 + 256 * 128 + 128 * 64) * 2
                        + (256 + 128 + 64 + 64 + 1) * 4))

    out_flat = pl.pallas_call(
        functools.partial(mlp_kernel, lane_dense=lane_dense_out),
        out_shape=out_shape,
        grid_spec=pl.GridSpec(
            grid=(num_tiles,),
            in_specs=[
                pl.BlockSpec((tb_eff, D), lambda i: (i, 0)),   # x tile (f32)
                pinned(w1), pinned(b1),
                pinned(w2), pinned(b2),
                pinned(w3), pinned(b3),
                pinned(w4_row), pinned(b4),
            ],
            out_specs=out_spec,
        ),
        compiler_params=pltpu.CompilerParams(
            dimension_semantics=(_batch_axis_semantics(num_tiles),),
            vmem_limit_bytes=vmem_limit),
        cost_estimate=cost,
    )(x, w1, b1, w2, b2, w3, b3, w4_row, b4)

    return out_flat.reshape(-1)[:B].reshape(B, 1)


def init_params(key, input_dim):
    """Deterministic init; nn.Linear(in, out) shapes, stored (in, out)."""
    dims = [(input_dim, 256), (256, 128), (128, 64), (64, 1)]
    params = {}
    for i, (din, dout) in enumerate(dims, start=1):
        key, kw, kb = jax.random.split(key, 3)
        bound = 1.0 / jnp.sqrt(din)  # PyTorch default U(-1/sqrt(in), 1/sqrt(in))
        params[f"w{i}"] = jax.random.uniform(kw, (din, dout), jnp.float32,
                                             minval=-bound, maxval=bound)
        params[f"b{i}"] = jax.random.uniform(kb, (1, dout), jnp.float32,
                                             minval=-bound, maxval=bound)
    return params


def reference_forward(x, params):
    """Pure-JAX reference mimicking the kernel's bf16-matmul / f32-accumulate.
    (bf16 MXU inputs + f32 accumulation can deviate slightly from a pure-f32
    PyTorch Linear stack; that precision tradeoff is intentional here.)"""
    def mm(a, w):
        return jnp.dot(a.astype(jnp.bfloat16), w.astype(jnp.bfloat16),
                       preferred_element_type=jnp.float32)
    h = jnp.maximum(mm(x, params["w1"]) + params["b1"], 0.0)
    h = jnp.maximum(mm(h, params["w2"]) + params["b2"], 0.0)
    h = jnp.maximum(mm(h, params["w3"]) + params["b3"], 0.0)
    w4_row = params["w4"].reshape(1, -1)
    return jnp.sum(h * w4_row, axis=-1, keepdims=True) + params["b4"].reshape(1, 1)


if __name__ == "__main__":
    key = jax.random.PRNGKey(0)
    batch, input_dim = 8, 32

    kx, kp = jax.random.split(key)
    x = jax.random.normal(kx, (batch, input_dim), jnp.float32)
    params = init_params(kp, input_dim)

    lane_dense = True
    try:
        out = jax.block_until_ready(
            house_price_predictor(x, params, lane_dense_out=True))
    except Exception:
        # Belt-and-braces: if this Mosaic build can't lower the (TB,1)->(1,TB)
        # relayout for the lane-dense store, fall back to the column output.
        lane_dense = False
        out = jax.block_until_ready(
            house_price_predictor(x, params, lane_dense_out=False))

    ref = reference_forward(x, params)
    assert out.shape == (batch, 1), out.shape
    assert jnp.allclose(out, ref, atol=1e-2, rtol=1e-2), "mismatch vs reference"

    # Ragged batch: exercises the <=7-row sublane pad + cdiv/partial-block path.
    x13 = jax.random.normal(jax.random.PRNGKey(1), (13, input_dim), jnp.float32)
    out13 = jax.block_until_ready(
        house_price_predictor(x13, params, lane_dense_out=lane_dense))
    ref13 = reference_forward(x13, params)
    assert out13.shape == (13, 1), out13.shape
    assert jnp.allclose(out13, ref13, atol=1e-2, rtol=1e-2), "ragged-batch mismatch"

    print("KERNEL_OK")
</pallas_src>

<mosaic_0001>
module attributes {stable_mosaic.version = 11 : i64} {
  func.func @mlp_kernel(%arg0: i32, %arg1: memref<8x32xf32, #tpu.memory_space<vmem>>, %arg2: memref<32x256xbf16, #tpu.memory_space<vmem>>, %arg3: memref<1x256xf32, #tpu.memory_space<vmem>>, %arg4: memref<256x128xbf16, #tpu.memory_space<vmem>>, %arg5: memref<1x128xf32, #tpu.memory_space<vmem>>, %arg6: memref<128x64xbf16, #tpu.memory_space<vmem>>, %arg7: memref<1x64xf32, #tpu.memory_space<vmem>>, %arg8: memref<1x64xf32, #tpu.memory_space<vmem>>, %arg9: memref<1x1xf32, #tpu.memory_space<vmem>>, %arg10: memref<1x8xf32, #tpu.memory_space<vmem>>) attributes {dimension_semantics = [#tpu.dimension_semantics<parallel>], iteration_bounds = array<i64: 1>, scalar_prefetch = 0 : i64, scratch_operands = 0 : i64, tpu.core_type = #tpu.core_type<tc>, window_params = [{transform_indices = @transform_0, window_bounds = array<i64: 8, 32>}, {pipeline_mode = #tpu.pipeline_mode<synchronous>, transform_indices = @transform_1, window_bounds = array<i64: 32, 256>}, {pipeline_mode = #tpu.pipeline_mode<synchronous>, transform_indices = @transform_2, window_bounds = array<i64: 1, 256>}, {pipeline_mode = #tpu.pipeline_mode<synchronous>, transform_indices = @transform_3, window_bounds = array<i64: 256, 128>}, {pipeline_mode = #tpu.pipeline_mode<synchronous>, transform_indices = @transform_4, window_bounds = array<i64: 1, 128>}, {pipeline_mode = #tpu.pipeline_mode<synchronous>, transform_indices = @transform_5, window_bounds = array<i64: 128, 64>}, {pipeline_mode = #tpu.pipeline_mode<synchronous>, transform_indices = @transform_6, window_bounds = array<i64: 1, 64>}, {pipeline_mode = #tpu.pipeline_mode<synchronous>, transform_indices = @transform_7, window_bounds = array<i64: 1, 64>}, {pipeline_mode = #tpu.pipeline_mode<synchronous>, transform_indices = @transform_8, window_bounds = array<i64: 1, 1>}, {transform_indices = @transform_9, window_bounds = array<i64: 1, 8>}]} {
    %c0 = arith.constant 0 : index
    %c0_0 = arith.constant 0 : index
    %0 = vector.load %arg1[%c0, %c0_0] : memref<8x32xf32, #tpu.memory_space<vmem>>, vector<8x32xf32>
    %1 = arith.truncf %0 : vector<8x32xf32> to vector<8x32xbf16>
    %c0_1 = arith.constant 0 : index
    %c0_2 = arith.constant 0 : index
    %2 = vector.load %arg2[%c0_1, %c0_2] : memref<32x256xbf16, #tpu.memory_space<vmem>>, vector<32x256xbf16>
    %cst = arith.constant dense<0.000000e+00> : vector<8x256xf32>
    %3 = tpu.matmul %1, %2, %cst {dimension_numbers = #tpu.dot_dimension_numbers<[1], [0], [0], [1], [0, 0, 1, 1], [], []>} : vector<8x32xbf16>, vector<32x256xbf16>, vector<8x256xf32> -> vector<8x256xf32>
    %c0_3 = arith.constant 0 : index
    %c0_4 = arith.constant 0 : index
    %4 = vector.load %arg3[%c0_3, %c0_4] : memref<1x256xf32, #tpu.memory_space<vmem>>, vector<1x256xf32>
    %5 = vector.broadcast %4 : vector<1x256xf32> to vector<8x256xf32>
    %6 = arith.addf %3, %5 : vector<8x256xf32>
    %cst_5 = arith.constant 0.000000e+00 : f32
    %7 = vector.broadcast %cst_5 : f32 to vector<8x256xf32>
    %8 = arith.maximumf %6, %7 : vector<8x256xf32>
    %9 = arith.truncf %8 : vector<8x256xf32> to vector<8x256xbf16>
    %c0_6 = arith.constant 0 : index
    %c0_7 = arith.constant 0 : index
    %10 = vector.load %arg4[%c0_6, %c0_7] : memref<256x128xbf16, #tpu.memory_space<vmem>>, vector<256x128xbf16>
    %cst_8 = arith.constant dense<0.000000e+00> : vector<8x128xf32>
    %11 = tpu.matmul %9, %10, %cst_8 {dimension_numbers = #tpu.dot_dimension_numbers<[1], [0], [0], [1], [0, 0, 1, 1], [], []>} : vector<8x256xbf16>, vector<256x128xbf16>, vector<8x128xf32> -> vector<8x128xf32>
    %c0_9 = arith.constant 0 : index
    %c0_10 = arith.constant 0 : index
    %12 = vector.load %arg5[%c0_9, %c0_10] : memref<1x128xf32, #tpu.memory_space<vmem>>, vector<1x128xf32>
    %13 = vector.broadcast %12 : vector<1x128xf32> to vector<8x128xf32>
    %14 = arith.addf %11, %13 : vector<8x128xf32>
    %cst_11 = arith.constant 0.000000e+00 : f32
    %15 = vector.broadcast %cst_11 : f32 to vector<8x128xf32>
    %16 = arith.maximumf %14, %15 : vector<8x128xf32>
    %17 = arith.truncf %16 : vector<8x128xf32> to vector<8x128xbf16>
    %c0_12 = arith.constant 0 : index
    %c0_13 = arith.constant 0 : index
    %18 = vector.load %arg6[%c0_12, %c0_13] : memref<128x64xbf16, #tpu.memory_space<vmem>>, vector<128x64xbf16>
    %cst_14 = arith.constant dense<0.000000e+00> : vector<8x64xf32>
    %19 = tpu.matmul %17, %18, %cst_14 {dimension_numbers = #tpu.dot_dimension_numbers<[1], [0], [0], [1], [0, 0, 1, 1], [], []>} : vector<8x128xbf16>, vector<128x64xbf16>, vector<8x64xf32> -> vector<8x64xf32>
    %c0_15 = arith.constant 0 : index
    %c0_16 = arith.constant 0 : index
    %20 = vector.load %arg7[%c0_15, %c0_16] : memref<1x64xf32, #tpu.memory_space<vmem>>, vector<1x64xf32>
    %21 = vector.broadcast %20 : vector<1x64xf32> to vector<8x64xf32>
    %22 = arith.addf %19, %21 : vector<8x64xf32>
    %cst_17 = arith.constant 0.000000e+00 : f32
    %23 = vector.broadcast %cst_17 : f32 to vector<8x64xf32>
    %24 = arith.maximumf %22, %23 : vector<8x64xf32>
    %c0_18 = arith.constant 0 : index
    %c0_19 = arith.constant 0 : index
    %25 = vector.load %arg8[%c0_18, %c0_19] : memref<1x64xf32, #tpu.memory_space<vmem>>, vector<1x64xf32>
    %26 = vector.broadcast %25 : vector<1x64xf32> to vector<8x64xf32>
    %27 = arith.mulf %24, %26 : vector<8x64xf32>
    %cst_20 = arith.constant dense<0.000000e+00> : vector<8xf32>
    %28 = vector.multi_reduction <add>, %27, %cst_20 [1] : vector<8x64xf32> to vector<8xf32>
    %29 = vector.shape_cast %28 : vector<8xf32> to vector<8x1xf32>
    %c0_21 = arith.constant 0 : index
    %c0_22 = arith.constant 0 : index
    %30 = vector.load %arg9[%c0_21, %c0_22] : memref<1x1xf32, #tpu.memory_space<vmem>>, vector<1x1xf32>
    %31 = vector.broadcast %30 : vector<1x1xf32> to vector<8x1xf32>
    %32 = arith.addf %29, %31 : vector<8x1xf32>
    %33 = tpu.transpose %32, [1, 0] : vector<8x1xf32> -> vector<1x8xf32>
    %c0_23 = arith.constant 0 : index
    %c0_24 = arith.constant 0 : index
    %34 = vector.load %arg10[%c0_23, %c0_24] : memref<1x8xf32, #tpu.memory_space<vmem>>, vector<1x8xf32>
    tpu.vector_store %arg10[%c0_23, %c0_24], %33 {strides = array<i32>} : memref<1x8xf32, #tpu.memory_space<vmem>>, vector<1x8xf32>,
    return
  }
  func.func @transform_0(%arg0: i32) -> (i32, i32) {
    %c0_i32 = arith.constant 0 : i32
    %c0_i32_0 = arith.constant 0 : i32
    return %arg0, %c0_i32 : i32, i32
  }
  func.func @transform_1(%arg0: i32) -> (i32, i32) {
    %c0_i32 = arith.constant 0 : i32
    %c0_i32_0 = arith.constant 0 : i32
    %c0_i32_1 = arith.constant 0 : i32
    return %c0_i32, %c0_i32_0 : i32, i32
  }
  func.func @transform_2(%arg0: i32) -> (i32, i32) {
    %c0_i32 = arith.constant 0 : i32
    %c0_i32_0 = arith.constant 0 : i32
    %c0_i32_1 = arith.constant 0 : i32
    return %c0_i32, %c0_i32_0 : i32, i32
  }
  func.func @transform_3(%arg0: i32) -> (i32, i32) {
    %c0_i32 = arith.constant 0 : i32
    %c0_i32_0 = arith.constant 0 : i32
    %c0_i32_1 = arith.constant 0 : i32
    return %c0_i32, %c0_i32_0 : i32, i32
  }
  func.func @transform_4(%arg0: i32) -> (i32, i32) {
    %c0_i32 = arith.constant 0 : i32
    %c0_i32_0 = arith.constant 0 : i32
    %c0_i32_1 = arith.constant 0 : i32
    return %c0_i32, %c0_i32_0 : i32, i32
  }
  func.func @transform_5(%arg0: i32) -> (i32, i32) {
    %c0_i32 = arith.constant 0 : i32
    %c0_i32_0 = arith.constant 0 : i32
    %c0_i32_1 = arith.constant 0 : i32
    return %c0_i32, %c0_i32_0 : i32, i32
  }
  func.func @transform_6(%arg0: i32) -> (i32, i32) {
    %c0_i32 = arith.constant 0 : i32
    %c0_i32_0 = arith.constant 0 : i32
    %c0_i32_1 = arith.constant 0 : i32
    return %c0_i32, %c0_i32_0 : i32, i32
  }
  func.func @transform_7(%arg0: i32) -> (i32, i32) {
    %c0_i32 = arith.constant 0 : i32
    %c0_i32_0 = arith.constant 0 : i32
    %c0_i32_1 = arith.constant 0 : i32
    return %c0_i32, %c0_i32_0 : i32, i32
  }
  func.func @transform_8(%arg0: i32) -> (i32, i32) {
    %c0_i32 = arith.constant 0 : i32
    %c0_i32_0 = arith.constant 0 : i32
    %c0_i32_1 = arith.constant 0 : i32
    return %c0_i32, %c0_i32_0 : i32, i32
  }
  func.func @transform_9(%arg0: i32) -> (i32, i32) {
    %c0_i32 = arith.constant 0 : i32
    %c0_i32_0 = arith.constant 0 : i32
    return %c0_i32, %arg0 : i32, i32
  }
}

module attributes {stable_mosaic.version = 11 : i64} {
  func.func @mlp_kernel(%arg0: i32, %arg1: memref<8x32xf32, #tpu.memory_space<vmem>>, %arg2: memref<32x256xbf16, #tpu.memory_space<vmem>>, %arg3: memref<1x256xf32, #tpu.memory_space<vmem>>, %arg4: memref<256x128xbf16, #tpu.memory_space<vmem>>, %arg5: memref<1x128xf32, #tpu.memory_space<vmem>>, %arg6: memref<128x64xbf16, #tpu.memory_space<vmem>>, %arg7: memref<1x64xf32, #tpu.memory_space<vmem>>, %arg8: memref<1x64xf32, #tpu.memory_space<vmem>>, %arg9: memref<1x1xf32, #tpu.memory_space<vmem>>, %arg10: memref<8x1xf32, #tpu.memory_space<vmem>>) attributes {dimension_semantics = [#tpu.dimension_semantics<parallel>], iteration_bounds = array<i64: 1>, scalar_prefetch = 0 : i64, scratch_operands = 0 : i64, tpu.core_type = #tpu.core_type<tc>, window_params = [{transform_indices = @transform_0, window_bounds = array<i64: 8, 32>}, {pipeline_mode = #tpu.pipeline_mode<synchronous>, transform_indices = @transform_1, window_bounds = array<i64: 32, 256>}, {pipeline_mode = #tpu.pipeline_mode<synchronous>, transform_indices = @transform_2, window_bounds = array<i64: 1, 256>}, {pipeline_mode = #tpu.pipeline_mode<synchronous>, transform_indices = @transform_3, window_bounds = array<i64: 256, 128>}, {pipeline_mode = #tpu.pipeline_mode<synchronous>, transform_indices = @transform_4, window_bounds = array<i64: 1, 128>}, {pipeline_mode = #tpu.pipeline_mode<synchronous>, transform_indices = @transform_5, window_bounds = array<i64: 128, 64>}, {pipeline_mode = #tpu.pipeline_mode<synchronous>, transform_indices = @transform_6, window_bounds = array<i64: 1, 64>}, {pipeline_mode = #tpu.pipeline_mode<synchronous>, transform_indices = @transform_7, window_bounds = array<i64: 1, 64>}, {pipeline_mode = #tpu.pipeline_mode<synchronous>, transform_indices = @transform_8, window_bounds = array<i64: 1, 1>}, {transform_indices = @transform_9, window_bounds = array<i64: 8, 1>}]} {
    %c0 = arith.constant 0 : index
    %c0_0 = arith.constant 0 : index
    %0 = vector.load %arg1[%c0, %c0_0] : memref<8x32xf32, #tpu.memory_space<vmem>>, vector<8x32xf32>
    %1 = arith.truncf %0 : vector<8x32xf32> to vector<8x32xbf16>
    %c0_1 = arith.constant 0 : index
    %c0_2 = arith.constant 0 : index
    %2 = vector.load %arg2[%c0_1, %c0_2] : memref<32x256xbf16, #tpu.memory_space<vmem>>, vector<32x256xbf16>
    %cst = arith.constant dense<0.000000e+00> : vector<8x256xf32>
    %3 = tpu.matmul %1, %2, %cst {dimension_numbers = #tpu.dot_dimension_numbers<[1], [0], [0], [1], [0, 0, 1, 1], [], []>} : vector<8x32xbf16>, vector<32x256xbf16>, vector<8x256xf32> -> vector<8x256xf32>
    %c0_3 = arith.constant 0 : index
    %c0_4 = arith.constant 0 : index
    %4 = vector.load %arg3[%c0_3, %c0_4] : memref<1x256xf32, #tpu.memory_space<vmem>>, vector<1x256xf32>
    %5 = vector.broadcast %4 : vector<1x256xf32> to vector<8x256xf32>
    %6 = arith.addf %3, %5 : vector<8x256xf32>
    %cst_5 = arith.constant 0.000000e+00 : f32
    %7 = vector.broadcast %cst_5 : f32 to vector<8x256xf32>
    %8 = arith.maximumf %6, %7 : vector<8x256xf32>
    %9 = arith.truncf %8 : vector<8x256xf32> to vector<8x256xbf16>
    %c0_6 = arith.constant 0 : index
    %c0_7 = arith.constant 0 : index
    %10 = vector.load %arg4[%c0_6, %c0_7] : memref<256x128xbf16, #tpu.memory_space<vmem>>, vector<256x128xbf16>
    %cst_8 = arith.constant dense<0.000000e+00> : vector<8x128xf32>
    %11 = tpu.matmul %9, %10, %cst_8 {dimension_numbers = #tpu.dot_dimension_numbers<[1], [0], [0], [1], [0, 0, 1, 1], [], []>} : vector<8x256xbf16>, vector<256x128xbf16>, vector<8x128xf32> -> vector<8x128xf32>
    %c0_9 = arith.constant 0 : index
    %c0_10 = arith.constant 0 : index
    %12 = vector.load %arg5[%c0_9, %c0_10] : memref<1x128xf32, #tpu.memory_space<vmem>>, vector<1x128xf32>
    %13 = vector.broadcast %12 : vector<1x128xf32> to vector<8x128xf32>
    %14 = arith.addf %11, %13 : vector<8x128xf32>
    %cst_11 = arith.constant 0.000000e+00 : f32
    %15 = vector.broadcast %cst_11 : f32 to vector<8x128xf32>
    %16 = arith.maximumf %14, %15 : vector<8x128xf32>
    %17 = arith.truncf %16 : vector<8x128xf32> to vector<8x128xbf16>
    %c0_12 = arith.constant 0 : index
    %c0_13 = arith.constant 0 : index
    %18 = vector.load %arg6[%c0_12, %c0_13] : memref<128x64xbf16, #tpu.memory_space<vmem>>, vector<128x64xbf16>
    %cst_14 = arith.constant dense<0.000000e+00> : vector<8x64xf32>
    %19 = tpu.matmul %17, %18, %cst_14 {dimension_numbers = #tpu.dot_dimension_numbers<[1], [0], [0], [1], [0, 0, 1, 1], [], []>} : vector<8x128xbf16>, vector<128x64xbf16>, vector<8x64xf32> -> vector<8x64xf32>
    %c0_15 = arith.constant 0 : index
    %c0_16 = arith.constant 0 : index
    %20 = vector.load %arg7[%c0_15, %c0_16] : memref<1x64xf32, #tpu.memory_space<vmem>>, vector<1x64xf32>
    %21 = vector.broadcast %20 : vector<1x64xf32> to vector<8x64xf32>
    %22 = arith.addf %19, %21 : vector<8x64xf32>
    %cst_17 = arith.constant 0.000000e+00 : f32
    %23 = vector.broadcast %cst_17 : f32 to vector<8x64xf32>
    %24 = arith.maximumf %22, %23 : vector<8x64xf32>
    %c0_18 = arith.constant 0 : index
    %c0_19 = arith.constant 0 : index
    %25 = vector.load %arg8[%c0_18, %c0_19] : memref<1x64xf32, #tpu.memory_space<vmem>>, vector<1x64xf32>
    %26 = vector.broadcast %25 : vector<1x64xf32> to vector<8x64xf32>
    %27 = arith.mulf %24, %26 : vector<8x64xf32>
    %cst_20 = arith.constant dense<0.000000e+00> : vector<8xf32>
    %28 = vector.multi_reduction <add>, %27, %cst_20 [1] : vector<8x64xf32> to vector<8xf32>
    %29 = vector.shape_cast %28 : vector<8xf32> to vector<8x1xf32>
    %c0_21 = arith.constant 0 : index
    %c0_22 = arith.constant 0 : index
    %30 = vector.load %arg9[%c0_21, %c0_22] : memref<1x1xf32, #tpu.memory_space<vmem>>, vector<1x1xf32>
    %31 = vector.broadcast %30 : vector<1x1xf32> to vector<8x1xf32>
    %32 = arith.addf %29, %31 : vector<8x1xf32>
    %c0_23 = arith.constant 0 : index
    %c0_24 = arith.constant 0 : index
    %33 = vector.load %arg10[%c0_23, %c0_24] : memref<8x1xf32, #tpu.memory_space<vmem>>, vector<8x1xf32>
    tpu.vector_store %arg10[%c0_23, %c0_24], %32 {strides = array<i32>} : memref<8x1xf32, #tpu.memory_space<vmem>>, vector<8x1xf32>,
    return
  }
  func.func @transform_0(%arg0: i32) -> (i32, i32) {
    %c0_i32 = arith.constant 0 : i32
    %c0_i32_0 = arith.constant 0 : i32
    return %arg0, %c0_i32 : i32, i32
  }
  func.func @transform_1(%arg0: i32) -> (i32, i32) {
    %c0_i32 = arith.constant 0 : i32
    %c0_i32_0 = arith.constant 0 : i32
    %c0_i32_1 = arith.constant 0 : i32
    return %c0_i32, %c0_i32_0 : i32, i32
  }
  func.func @transform_2(%arg0: i32) -> (i32, i32) {
    %c0_i32 = arith.constant 0 : i32
    %c0_i32_0 = arith.constant 0 : i32
    %c0_i32_1 = arith.constant 0 : i32
    return %c0_i32, %c0_i32_0 : i32, i32
  }
  func.func @transform_3(%arg0: i32) -> (i32, i32) {
    %c0_i32 = arith.constant 0 : i32
    %c0_i32_0 = arith.constant 0 : i32
    %c0_i32_1 = arith.constant 0 : i32
    return %c0_i32, %c0_i32_0 : i32, i32
  }
  func.func @transform_4(%arg0: i32) -> (i32, i32) {
    %c0_i32 = arith.constant 0 : i32
    %c0_i32_0 = arith.constant 0 : i32
    %c0_i32_1 = arith.constant 0 : i32
    return %c0_i32, %c0_i32_0 : i32, i32
  }
  func.func @transform_5(%arg0: i32) -> (i32, i32) {
    %c0_i32 = arith.constant 0 : i32
    %c0_i32_0 = arith.constant 0 : i32
    %c0_i32_1 = arith.constant 0 : i32
    return %c0_i32, %c0_i32_0 : i32, i32
  }
  func.func @transform_6(%arg0: i32) -> (i32, i32) {
    %c0_i32 = arith.constant 0 : i32
    %c0_i32_0 = arith.constant 0 : i32
    %c0_i32_1 = arith.constant 0 : i32
    return %c0_i32, %c0_i32_0 : i32, i32
  }
  func.func @transform_7(%arg0: i32) -> (i32, i32) {
    %c0_i32 = arith.constant 0 : i32
    %c0_i32_0 = arith.constant 0 : i32
    %c0_i32_1 = arith.constant 0 : i32
    return %c0_i32, %c0_i32_0 : i32, i32
  }
  func.func @transform_8(%arg0: i32) -> (i32, i32) {
    %c0_i32 = arith.constant 0 : i32
    %c0_i32_0 = arith.constant 0 : i32
    %c0_i32_1 = arith.constant 0 : i32
    return %c0_i32, %c0_i32_0 : i32, i32
  }
  func.func @transform_9(%arg0: i32) -> (i32, i32) {
    %c0_i32 = arith.constant 0 : i32
    %c0_i32_0 = arith.constant 0 : i32
    return %arg0, %c0_i32 : i32, i32
  }
}

</mosaic_0001>

<llo_original>
// kernel: tpu_custom_call.1
$region0: #{tpu_custom_call.1}
  #allocation0 [shape = 'u32[]', space=smem, size = 0x4, offset = 0x4, fixed_abs, tag = 'smem constant byte address 0x4 - core index']
  #allocation1 [shape = 'u32[72,128]{1,0:T(1,128)}', space=vmem, size = 0x9000, scoped, tag = 'internal scratch']
  #allocation2 [shape = 'f32[1,1]{1,0:T(1,128)S(1)}', space=vmem, size = 0x200, scoped, tag = 'scoped memory for tpu_custom_call.1']
  %s0 = inlined_call_operand.vmem [shape: f32[8,32], index: 0, kind: input, shape index: {}]
  %s1 = inlined_call_operand.vmem [shape: bf16[32,256], index: 1, kind: input, shape index: {}]
  %s2 = inlined_call_operand.vmem [shape: f32[1,256], index: 2, kind: input, shape index: {}]
  %s3 = inlined_call_operand.hbm [shape: bf16[256,128], index: 3, kind: input, shape index: {}]
  %s4 = inlined_call_operand.vmem [shape: f32[1,128], index: 4, kind: input, shape index: {}]
  %s5 = inlined_call_operand.vmem [shape: bf16[128,64], index: 5, kind: input, shape index: {}]
  %s6 = inlined_call_operand.vmem [shape: f32[1,64], index: 6, kind: input, shape index: {}]
  %s7 = inlined_call_operand.vmem [shape: f32[1,64], index: 7, kind: input, shape index: {}]
  %s8 = inlined_call_operand.<no memory space> [shape: f32[1,1], index: 8, kind: input, shape index: {}]
  %s9 = inlined_call_operand.hbm [shape: f32[1,8], index: 9, kind: output, shape index: {}]
  %s10 = sld [smem:[#allocation0]]
  $region50: #{tpu_custom_call.1} parent=0
    _
  %s12 = ssub.s32 1, %s10
  %s13 = scalar_select 0, %s12, %s10
  %v14 = vstv %s8
  %15 = vst [vmem:[#allocation2] sm:$0x1] %v14
  $region1: #{tpu_custom_call.1} parent=0
    #allocation3 [shape = 'u8[65536]{0}', space=vmem, size = 0x10000, scoped, tag = 'input window, operand 3, single buffered']
    #allocation4 [shape = 's32[1]{0}', space=sflag, size = 0x4, scoped, tag = 'scoped memory for tpu_custom_call.1']
    #allocation5 [shape = 's32[1]{0}', space=sflag, size = 0x4, scoped, tag = 'scoped memory for tpu_custom_call.1']
    #allocation6 [shape = 'u8[512]{0}', space=vmem, size = 0x400, scoped, tag = 'output window, operand 0, single buffered']
    %16 = vsyncpa [#allocation4], 0
    %17 = vsyncpa [#allocation5], 0
    // Predicated region
    $region2: #{tpu_custom_call.1} parent=1 // pred_check
      _
    $region3: #{tpu_custom_call.1} parent=1 // pred_check_branch
      %19 = sbr.rel (0) target = $region5
    $region4: #{tpu_custom_call.1} parent=1 // pred_region
      _
    $region5: #{tpu_custom_call.1} parent=1 // pred_fallthru
      _
    // Predicated region
    $region6: #{tpu_custom_call.1} parent=1 // pred_check
      _
    $region7: #{tpu_custom_call.1} parent=1 // pred_check_branch
      %21 = sbr.rel (0) target = $region9
    $region8: #{tpu_custom_call.1} parent=1 // pred_region
      _
    $region9: #{tpu_custom_call.1} parent=1 // pred_fallthru
      _
    // Predicated region
    $region10: #{tpu_custom_call.1} parent=1 // pred_check
      _
    $region11: #{tpu_custom_call.1} parent=1 // pred_check_branch
      %23 = sbr.rel (0) target = $region13
    $region12: #{tpu_custom_call.1} parent=1 // pred_region
      _
    $region13: #{tpu_custom_call.1} parent=1 // pred_fallthru
      _
    // Predicated region
    $region14: #{tpu_custom_call.1} parent=1 // pred_check
      _
    $region15: #{tpu_custom_call.1} parent=1 // pred_check_branch
      %25 = sbr.rel (0) target = $region17
    $region16: #{tpu_custom_call.1} parent=1 // pred_region
      %27 = vsyncadd [#allocation4], 0
      %s28 = sshll.u32 %s3, 4
      %s29 = int_to_ptr.hbm [resolvable:$true] %s28
      %s30 = sshll.u32 [#allocation3], 4
      %s31 = int_to_ptr.vmem [resolvable:$true] %s30
      %36 = dma.hbm_to_vmem [thread:$0]  %s29, 2048, %s31, [#allocation4], 64, 64, 4
    $region17: #{tpu_custom_call.1} parent=1 // pred_fallthru
      _
    // Predicated region
    $region18: #{tpu_custom_call.1} parent=1 // pred_check
      _
    $region19: #{tpu_custom_call.1} parent=1 // pred_check_branch
      %38 = sbr.rel (0) target = $region21
    $region20: #{tpu_custom_call.1} parent=1 // pred_region
      _
    $region21: #{tpu_custom_call.1} parent=1 // pred_fallthru
      _
    // Predicated region
    $region22: #{tpu_custom_call.1} parent=1 // pred_check
      _
    $region23: #{tpu_custom_call.1} parent=1 // pred_check_branch
      %40 = sbr.rel (0) target = $region25
    $region24: #{tpu_custom_call.1} parent=1 // pred_region
      _
    $region25: #{tpu_custom_call.1} parent=1 // pred_fallthru
      _
    // Predicated region
    $region26: #{tpu_custom_call.1} parent=1 // pred_check
      _
    $region27: #{tpu_custom_call.1} parent=1 // pred_check_branch
      %42 = sbr.rel (0) target = $region29
    $region28: #{tpu_custom_call.1} parent=1 // pred_region
      _
    $region29: #{tpu_custom_call.1} parent=1 // pred_fallthru
      _
    // Predicated region
    $region30: #{tpu_custom_call.1} parent=1 // pred_check
      _
    $region31: #{tpu_custom_call.1} parent=1 // pred_check_branch
      %44 = sbr.rel (0) target = $region33
    $region32: #{tpu_custom_call.1} parent=1 // pred_region
      _
    $region33: #{tpu_custom_call.1} parent=1 // pred_fallthru
      _
    // Predicated region
    $region34: #{tpu_custom_call.1} parent=1 // pred_check
      _
    $region35: #{tpu_custom_call.1} parent=1 // pred_check_branch
      %46 = sbr.rel (0) target = $region37
    $region36: #{tpu_custom_call.1} parent=1 // pred_region
      _
    $region37: #{tpu_custom_call.1} parent=1 // pred_fallthru
      _
    // Predicated region
    $region38: #{tpu_custom_call.1} parent=1 // pred_check
      _
    $region39: #{tpu_custom_call.1} parent=1 // pred_check_branch
      %48 = sbr.rel (0) target = $region41
    $region40: #{tpu_custom_call.1} parent=1 // pred_region
      %50 = dma.done [#allocation4], 2048
    $region41: #{tpu_custom_call.1} parent=1 // pred_fallthru
      _
    %v52 = vld [vmem:[%s0] sm:$0xff]
    %v53 = vpack.c.bf16 %v52, %v52
    %v54 = vld [vmem:[%s1] sm:$0xff]
    %v55 = vld [vmem:[%s1 + $0x8] sm:$0xff]
    %v56 = vld [vmem:[%s1 + $0x10] sm:$0xff]
    %v57 = vld [vmem:[%s1 + $0x18] sm:$0xff]
    %v58 = vld [vmem:[%s2] sm:$0x3]
    %v60 = vperm.slane %v58, 0
    %v61 = vperm.slane %v58, 1
    %v68 = vunpack.c.l.b16 %v54
    %v69 = vunpack.c.h.b16 %v54
    %v70 = vunpack.c.l.b16 %v55
    %v71 = vunpack.c.h.b16 %v55
    %v72 = vunpack.c.l.b16 %v56
    %v73 = vunpack.c.h.b16 %v56
    %v74 = vunpack.c.l.b16 %v57
    %v75 = vunpack.c.h.b16 %v57
    %v76 = vpack.c.b16 %v70, %v68
    %v77 = vpack.c.b16 %v71, %v69
    %v78 = vpack.c.b16 %v74, %v72
    %v79 = vpack.c.b16 %v75, %v73
    %vm84 = vcmask 261120
    %v86 = vsel %vm84, %v53, 0
    %88 = vmatpush.bf16.msra.mxu0 0
    %89 = vmatpush.bf16.msra.mxu0 0
    %90 = vmatpush.bf16.msra.mxu0 0
    %91 = vmatpush.bf16.msra.mxu0 0
    %92 = vmatpush.bf16.msra.mxu0 0
    %93 = vmatpush.bf16.msra.mxu0 0
    %94 = vmatpush.bf16.msra.mxu0 %v78
    %95 = vmatpush.bf16.msra.mxu0 %v76
    %96 = vmatmul.bf16.gmra.mxu0 %v86
    %v97 = vpop.f32.mrf.mxu0
    %v98 = vadd.f32 %v60, %v97
    %v99 = vpop.f32.mrf.mxu0
    %100 = vdwg.mxu0
    %101 = vmatpush.bf16.msra.mxu0 0
    %102 = vmatpush.bf16.msra.mxu0 0
    %103 = vmatpush.bf16.msra.mxu0 0
    %104 = vmatpush.bf16.msra.mxu0 0
    %105 = vmatpush.bf16.msra.mxu0 0
    %106 = vmatpush.bf16.msra.mxu0 0
    %107 = vmatpush.bf16.msra.mxu0 %v79
    %108 = vmatpush.bf16.msra.mxu0 %v77
    %109 = vmatmul.bf16.gmra.mxu0 %v86
    %v110 = vpop.f32.mrf.mxu0
    %v111 = vadd.f32 %v61, %v110
    %v112 = vpop.f32.mrf.mxu0
    %113 = vdwg.mxu0
    %v114 = vmax.f32 %v98, 0.0
    %v115 = vmax.f32 %v111, 0.0
    %v116 = vpack.c.bf16 %v114, %v114
    %v117 = vpack.c.bf16 %v115, %v115
    %v118 = vld [vmem:[#allocation3] sm:$0xf]
    %v119 = vld [vmem:[#allocation3 + $0x4] sm:$0xf]
    %v120 = vld [vmem:[#allocation3 + $0x8] sm:$0xf]
    %v121 = vld [vmem:[#allocation3 + $0xc] sm:$0xf]
    %v122 = vld [vmem:[#allocation3 + $0x10] sm:$0xf]
    %v123 = vld [vmem:[#allocation3 + $0x14] sm:$0xf]
    %v124 = vld [vmem:[#allocation3 + $0x18] sm:$0xf]
    %v125 = vld [vmem:[#allocation3 + $0x1c] sm:$0xf]
    %v126 = vld [vmem:[#allocation3 + $0x20] sm:$0xf]
    %v127 = vld [vmem:[#allocation3 + $0x24] sm:$0xf]
    %v128 = vld [vmem:[#allocation3 + $0x28] sm:$0xf]
    %v129 = vld [vmem:[#allocation3 + $0x2c] sm:$0xf]
    %v130 = vld [vmem:[#allocation3 + $0x30] sm:$0xf]
    %v131 = vld [vmem:[#allocation3 + $0x34] sm:$0xf]
    %v132 = vld [vmem:[#allocation3 + $0x38] sm:$0xf]
    %v133 = vld [vmem:[#allocation3 + $0x3c] sm:$0xf]
    %v134 = vld [vmem:[#allocation3 + $0x40] sm:$0xf]
    %v135 = vld [vmem:[#allocation3 + $0x44] sm:$0xf]
    %v136 = vld [vmem:[#allocation3 + $0x48] sm:$0xf]
    %v137 = vld [vmem:[#allocation3 + $0x4c] sm:$0xf]
    %v138 = vld [vmem:[#allocation3 + $0x50] sm:$0xf]
    %v139 = vld [vmem:[#allocation3 + $0x54] sm:$0xf]
    %v140 = vld [vmem:[#allocation3 + $0x58] sm:$0xf]
    %v141 = vld [vmem:[#allocation3 + $0x5c] sm:$0xf]
    %v142 = vld [vmem:[#allocation3 + $0x60] sm:$0xf]
    %v143 = vld [vmem:[#allocation3 + $0x64] sm:$0xf]
    %v144 = vld [vmem:[#allocation3 + $0x68] sm:$0xf]
    %v145 = vld [vmem:[#allocation3 + $0x6c] sm:$0xf]
    %v146 = vld [vmem:[#allocation3 + $0x70] sm:$0xf]
    %v147 = vld [vmem:[#allocation3 + $0x74] sm:$0xf]
    %v148 = vld [vmem:[#allocation3 + $0x78] sm:$0xf]
    %v149 = vld [vmem:[#allocation3 + $0x7c] sm:$0xf]
    %v150 = vld [vmem:[%s4] sm:$0x1]
    %v152 = vperm.slane %v150, 0
    %v186 = vunpack.c.l.b16 %v118
    %v187 = vunpack.c.l.b16 %v119
    %v188 = vunpack.c.l.b16 %v120
    %v189 = vunpack.c.l.b16 %v121
    %v190 = vunpack.c.l.b16 %v122
    %v191 = vunpack.c.l.b16 %v123
    %v192 = vunpack.c.l.b16 %v124
    %v193 = vunpack.c.l.b16 %v125
    %v194 = vunpack.c.l.b16 %v126
    %v195 = vunpack.c.l.b16 %v127
    %v196 = vunpack.c.l.b16 %v128
    %v197 = vunpack.c.l.b16 %v129
    %v198 = vunpack.c.l.b16 %v130
    %v199 = vunpack.c.l.b16 %v131
    %v200 = vunpack.c.l.b16 %v132
    %v201 = vunpack.c.l.b16 %v133
    %v202 = vunpack.c.l.b16 %v134
    %v203 = vunpack.c.l.b16 %v135
    %v204 = vunpack.c.l.b16 %v136
    %v205 = vunpack.c.l.b16 %v137
    %v206 = vunpack.c.l.b16 %v138
    %v207 = vunpack.c.l.b16 %v139
    %v208 = vunpack.c.l.b16 %v140
    %v209 = vunpack.c.l.b16 %v141
    %v210 = vunpack.c.l.b16 %v142
    %v211 = vunpack.c.l.b16 %v143
    %v212 = vunpack.c.l.b16 %v144
    %v213 = vunpack.c.l.b16 %v145
    %v214 = vunpack.c.l.b16 %v146
    %v215 = vunpack.c.l.b16 %v147
    %v216 = vunpack.c.l.b16 %v148
    %v217 = vunpack.c.l.b16 %v149
    %v218 = vpack.c.b16 %v187, %v186
    %v219 = vpack.c.b16 %v189, %v188
    %v220 = vpack.c.b16 %v191, %v190
    %v221 = vpack.c.b16 %v193, %v192
    %v222 = vpack.c.b16 %v195, %v194
    %v223 = vpack.c.b16 %v197, %v196
    %v224 = vpack.c.b16 %v199, %v198
    %v225 = vpack.c.b16 %v201, %v200
    %v226 = vpack.c.b16 %v203, %v202
    %v227 = vpack.c.b16 %v205, %v204
    %v228 = vpack.c.b16 %v207, %v206
    %v229 = vpack.c.b16 %v209, %v208
    %v230 = vpack.c.b16 %v211, %v210
    %v231 = vpack.c.b16 %v213, %v212
    %v232 = vpack.c.b16 %v215, %v214
    %v233 = vpack.c.b16 %v217, %v216
    %250 = vmatpush.bf16.msra.mxu0 %v225
    %251 = vmatpush.bf16.msra.mxu0 %v224
    %252 = vmatpush.bf16.msra.mxu0 %v223
    %253 = vmatpush.bf16.msra.mxu0 %v222
    %254 = vmatpush.bf16.msra.mxu0 %v221
    %255 = vmatpush.bf16.msra.mxu0 %v220
    %256 = vmatpush.bf16.msra.mxu0 %v219
    %257 = vmatpush.bf16.msra.mxu0 %v218
    %258 = vmatmul.bf16.gmra.mxu0 %v116
    %v259 = vpop.f32.mrf.mxu0
    %v260 = vadd.f32 %v152, %v259
    %v261 = vpop.f32.mrf.mxu0
    %262 = vdwg.mxu0
    %263 = vmatpush.bf16.msra.mxu0 %v233
    %264 = vmatpush.bf16.msra.mxu0 %v232
    %265 = vmatpush.bf16.msra.mxu0 %v231
    %266 = vmatpush.bf16.msra.mxu0 %v230
    %267 = vmatpush.bf16.msra.mxu0 %v229
    %268 = vmatpush.bf16.msra.mxu0 %v228
    %269 = vmatpush.bf16.msra.mxu0 %v227
    %270 = vmatpush.bf16.msra.mxu0 %v226
    %271 = vmatmul.bf16.gmra.mxu0 %v117
    %v272 = vpop.f32.mrf.mxu0
    %v273 = vadd.f32 %v260, %v272
    %v274 = vpop.f32.mrf.mxu0
    %275 = vdwg.mxu0
    %v276 = vmax.f32 %v273, 0.0
    %v277 = vpack.c.bf16 %v276, %v276
    %v278 = vld [vmem:[%s5] sm:$0xf]
    %v279 = vld [vmem:[%s5 + $0x4] sm:$0xf]
    %v280 = vld [vmem:[%s5 + $0x8] sm:$0xf]
    %v281 = vld [vmem:[%s5 + $0xc] sm:$0xf]
    %v282 = vld [vmem:[%s5 + $0x10] sm:$0xf]
    %v283 = vld [vmem:[%s5 + $0x14] sm:$0xf]
    %v284 = vld [vmem:[%s5 + $0x18] sm:$0xf]
    %v285 = vld [vmem:[%s5 + $0x1c] sm:$0xf]
    %v286 = vld [vmem:[%s5 + $0x20] sm:$0xf]
    %v287 = vld [vmem:[%s5 + $0x24] sm:$0xf]
    %v288 = vld [vmem:[%s5 + $0x28] sm:$0xf]
    %v289 = vld [vmem:[%s5 + $0x2c] sm:$0xf]
    %v290 = vld [vmem:[%s5 + $0x30] sm:$0xf]
    %v291 = vld [vmem:[%s5 + $0x34] sm:$0xf]
    %v292 = vld [vmem:[%s5 + $0x38] sm:$0xf]
    %v293 = vld [vmem:[%s5 + $0x3c] sm:$0xf]
    %v294 = vld [vmem:[%s6] sm:$0x1]
    %v296 = vperm.slane %v294, 0
    %v314 = vunpack.c.l.b16 %v278
    %v315 = vunpack.c.l.b16 %v279
    %v316 = vunpack.c.l.b16 %v280
    %v317 = vunpack.c.l.b16 %v281
    %v318 = vunpack.c.l.b16 %v282
    %v319 = vunpack.c.l.b16 %v283
    %v320 = vunpack.c.l.b16 %v284
    %v321 = vunpack.c.l.b16 %v285
    %v322 = vunpack.c.l.b16 %v286
    %v323 = vunpack.c.l.b16 %v287
    %v324 = vunpack.c.l.b16 %v288
    %v325 = vunpack.c.l.b16 %v289
    %v326 = vunpack.c.l.b16 %v290
    %v327 = vunpack.c.l.b16 %v291
    %v328 = vunpack.c.l.b16 %v292
    %v329 = vunpack.c.l.b16 %v293
    %v330 = vpack.c.b16 %v315, %v314
    %v331 = vpack.c.b16 %v317, %v316
    %v332 = vpack.c.b16 %v319, %v318
    %v333 = vpack.c.b16 %v321, %v320
    %v334 = vpack.c.b16 %v323, %v322
    %v335 = vpack.c.b16 %v325, %v324
    %v336 = vpack.c.b16 %v327, %v326
    %v337 = vpack.c.b16 %v329, %v328
    %346 = vmatpush.bf16.msra.mxu0 %v337
    %347 = vmatpush.bf16.msra.mxu0 %v336
    %348 = vmatpush.bf16.msra.mxu0 %v335
    %349 = vmatpush.bf16.msra.mxu0 %v334
    %350 = vmatpush.bf16.msra.mxu0 %v333
    %351 = vmatpush.bf16.msra.mxu0 %v332
    %352 = vmatpush.bf16.msra.mxu0 %v331
    %353 = vmatpush.bf16.msra.mxu0 %v330
    %354 = vmatmul.bf16.gmra.mxu0 %v277
    %v355 = vpop.f32.mrf.mxu0
    %v356 = vadd.f32 %v296, %v355
    %v357 = vpop.f32.mrf.mxu0
    %358 = vdwg.mxu0
    %v359 = vmax.f32 %v356, 0.0
    %v360 = vld [vmem:[%s7] sm:$0x1]
    %v362 = vperm.slane %v360, 0
    %v364 = vmul.f32 %v359, %v362
    %vm365 = vcmask 523264
    %v366 = vsel %vm365, %v364, 0.0
    %367 = vadd.xlane.f32.xlu0 %v366
    %v368 = vpop.xlane.xlu0 %367
    %v369 = vld [vmem:[#allocation2] sm:$0x1]
    %v371 = vperm.slane %v369, 0
    %v373 = vadd.f32 %v368, %v371
    %374 = vxpose.xlu0.b32.start [1/16] %v373, 128
    %375 = vxpose.xlu0.b32.cont [2/16] 0.0, 128
    %376 = vxpose.xlu0.b32.cont [3/16] 0.0, 128
    %377 = vxpose.xlu0.b32.cont [4/16] 0.0, 128
    %378 = vxpose.xlu0.b32.cont [5/16] 0.0, 128
    %379 = vxpose.xlu0.b32.cont [6/16] 0.0, 128
    %380 = vxpose.xlu0.b32.cont [7/16] 0.0, 128
    %381 = vxpose.xlu0.b32.cont [8/16] 0.0, 128
    %382 = vxpose.xlu0.b32.cont [9/16] 0.0, 128
    %383 = vxpose.xlu0.b32.cont [10/16] 0.0, 128
    %384 = vxpose.xlu0.b32.cont [11/16] 0.0, 128
    %385 = vxpose.xlu0.b32.cont [12/16] 0.0, 128
    %386 = vxpose.xlu0.b32.cont [13/16] 0.0, 128
    %387 = vxpose.xlu0.b32.cont [14/16] 0.0, 128
    %388 = vxpose.xlu0.b32.cont [15/16] 0.0, 128
    %389 = vxpose.xlu0.b32.end [16/16] 0.0, 128
    %v390 = vpop.trf.xlu0
    %v391 = vpop.trf.xlu0
    %v392 = vpop.trf.xlu0
    %v393 = vpop.trf.xlu0
    %v394 = vpop.trf.xlu0
    %v395 = vpop.trf.xlu0
    %v396 = vpop.trf.xlu0
    %v397 = vpop.trf.xlu0
    %v398 = vpop.trf.xlu0
    %v399 = vpop.trf.xlu0
    %v400 = vpop.trf.xlu0
    %v401 = vpop.trf.xlu0
    %v402 = vpop.trf.xlu0
    %v403 = vpop.trf.xlu0
    %v404 = vpop.trf.xlu0
    %v405 = vpop.trf.xlu0
    %vm406 = vcmask 57344
    %407 = vst.msk [vmem:[#allocation6] sm:$0x1] %vm406, %v390
    // Predicated region
    $region42: #{tpu_custom_call.1} parent=1 // pred_check
      _
    $region43: #{tpu_custom_call.1} parent=1 // pred_check_branch
      %409 = sbr.rel (0) target = $region45
    $region44: #{tpu_custom_call.1} parent=1 // pred_region
      %411 = vsyncadd [#allocation5], 0
      %s413 = sshll.u32 [#allocation6], 4
      %s414 = int_to_ptr.vmem [resolvable:$true] %s413
      %s415 = sshll.u32 %s9, 4
      %s416 = int_to_ptr.hbm [resolvable:$true] %s415
      %418 = dma.vmem_to_hbm [thread:$0]  %s414, 16, %s416, [#allocation5]
    $region45: #{tpu_custom_call.1} parent=1 // pred_fallthru
      _
    // Predicated region
    $region46: #{tpu_custom_call.1} parent=1 // pred_check
      _
    $region47: #{tpu_custom_call.1} parent=1 // pred_check_branch
      %420 = sbr.rel (0) target = $region49
    $region48: #{tpu_custom_call.1} parent=1 // pred_region
      %422 = dma.done [#allocation5], 16
    $region49: #{tpu_custom_call.1} parent=1 // pred_fallthru
      _
    %423 = vsyncpa [#allocation4], 1
    %424 = vsyncpa [#allocation5], 1

// kernel: tpu_custom_call.1
$region0: #{tpu_custom_call.1}
  #allocation0 [shape = 'u32[]', space=smem, size = 0x4, offset = 0x4, fixed_abs, tag = 'smem constant byte address 0x4 - core index']
  #allocation1 [shape = 'u32[72,128]{1,0:T(1,128)}', space=vmem, size = 0x9000, scoped, tag = 'internal scratch']
  #allocation2 [shape = 'f32[1,1]{1,0:T(1,128)S(1)}', space=vmem, size = 0x200, scoped, tag = 'scoped memory for tpu_custom_call.1']
  %s0 = inlined_call_operand.vmem [shape: f32[8,32], index: 0, kind: input, shape index: {}]
  %s1 = inlined_call_operand.vmem [shape: bf16[32,256], index: 1, kind: input, shape index: {}]
  %s2 = inlined_call_operand.vmem [shape: f32[1,256], index: 2, kind: input, shape index: {}]
  %s3 = inlined_call_operand.hbm [shape: bf16[256,128], index: 3, kind: input, shape index: {}]
  %s4 = inlined_call_operand.vmem [shape: f32[1,128], index: 4, kind: input, shape index: {}]
  %s5 = inlined_call_operand.vmem [shape: bf16[128,64], index: 5, kind: input, shape index: {}]
  %s6 = inlined_call_operand.vmem [shape: f32[1,64], index: 6, kind: input, shape index: {}]
  %s7 = inlined_call_operand.vmem [shape: f32[1,64], index: 7, kind: input, shape index: {}]
  %s8 = inlined_call_operand.<no memory space> [shape: f32[1,1], index: 8, kind: input, shape index: {}]
  %s9 = inlined_call_operand.vmem [shape: f32[8,1], index: 9, kind: output, shape index: {}]
  %s10 = sld [smem:[#allocation0]]
  $region50: #{tpu_custom_call.1} parent=0
    _
  %s12 = ssub.s32 1, %s10
  %s13 = scalar_select 0, %s12, %s10
  %v14 = vstv %s8
  %15 = vst [vmem:[#allocation2] sm:$0x1] %v14
  $region1: #{tpu_custom_call.1} parent=0
    #allocation3 [shape = 'u8[65536]{0}', space=vmem, size = 0x10000, scoped, tag = 'input window, operand 3, single buffered']
    #allocation4 [shape = 's32[1]{0}', space=sflag, size = 0x4, scoped, tag = 'scoped memory for tpu_custom_call.1']
    %16 = vsyncpa [#allocation4], 0
    // Predicated region
    $region2: #{tpu_custom_call.1} parent=1 // pred_check
      _
    $region3: #{tpu_custom_call.1} parent=1 // pred_check_branch
      %18 = sbr.rel (0) target = $region5
    $region4: #{tpu_custom_call.1} parent=1 // pred_region
      _
    $region5: #{tpu_custom_call.1} parent=1 // pred_fallthru
      _
    // Predicated region
    $region6: #{tpu_custom_call.1} parent=1 // pred_check
      _
    $region7: #{tpu_custom_call.1} parent=1 // pred_check_branch
      %20 = sbr.rel (0) target = $region9
    $region8: #{tpu_custom_call.1} parent=1 // pred_region
      _
    $region9: #{tpu_custom_call.1} parent=1 // pred_fallthru
      _
    // Predicated region
    $region10: #{tpu_custom_call.1} parent=1 // pred_check
      _
    $region11: #{tpu_custom_call.1} parent=1 // pred_check_branch
      %22 = sbr.rel (0) target = $region13
    $region12: #{tpu_custom_call.1} parent=1 // pred_region
      _
    $region13: #{tpu_custom_call.1} parent=1 // pred_fallthru
      _
    // Predicated region
    $region14: #{tpu_custom_call.1} parent=1 // pred_check
      _
    $region15: #{tpu_custom_call.1} parent=1 // pred_check_branch
      %24 = sbr.rel (0) target = $region17
    $region16: #{tpu_custom_call.1} parent=1 // pred_region
      %26 = vsyncadd [#allocation4], 0
      %s27 = sshll.u32 %s3, 4
      %s28 = int_to_ptr.hbm [resolvable:$true] %s27
      %s29 = sshll.u32 [#allocation3], 4
      %s30 = int_to_ptr.vmem [resolvable:$true] %s29
      %35 = dma.hbm_to_vmem [thread:$0]  %s28, 2048, %s30, [#allocation4], 64, 64, 4
    $region17: #{tpu_custom_call.1} parent=1 // pred_fallthru
      _
    // Predicated region
    $region18: #{tpu_custom_call.1} parent=1 // pred_check
      _
    $region19: #{tpu_custom_call.1} parent=1 // pred_check_branch
      %37 = sbr.rel (0) target = $region21
    $region20: #{tpu_custom_call.1} parent=1 // pred_region
      _
    $region21: #{tpu_custom_call.1} parent=1 // pred_fallthru
      _
    // Predicated region
    $region22: #{tpu_custom_call.1} parent=1 // pred_check
      _
    $region23: #{tpu_custom_call.1} parent=1 // pred_check_branch
      %39 = sbr.rel (0) target = $region25
    $region24: #{tpu_custom_call.1} parent=1 // pred_region
      _
    $region25: #{tpu_custom_call.1} parent=1 // pred_fallthru
      _
    // Predicated region
    $region26: #{tpu_custom_call.1} parent=1 // pred_check
      _
    $region27: #{tpu_custom_call.1} parent=1 // pred_check_branch
      %41 = sbr.rel (0) target = $region29
    $region28: #{tpu_custom_call.1} parent=1 // pred_region
      _
    $region29: #{tpu_custom_call.1} parent=1 // pred_fallthru
      _
    // Predicated region
    $region30: #{tpu_custom_call.1} parent=1 // pred_check
      _
    $region31: #{tpu_custom_call.1} parent=1 // pred_check_branch
      %43 = sbr.rel (0) target = $region33
    $region32: #{tpu_custom_call.1} parent=1 // pred_region
      _
    $region33: #{tpu_custom_call.1} parent=1 // pred_fallthru
      _
    // Predicated region
    $region34: #{tpu_custom_call.1} parent=1 // pred_check
      _
    $region35: #{tpu_custom_call.1} parent=1 // pred_check_branch
      %45 = sbr.rel (0) target = $region37
    $region36: #{tpu_custom_call.1} parent=1 // pred_region
      _
    $region37: #{tpu_custom_call.1} parent=1 // pred_fallthru
      _
    // Predicated region
    $region38: #{tpu_custom_call.1} parent=1 // pred_check
      _
    $region39: #{tpu_custom_call.1} parent=1 // pred_check_branch
      %47 = sbr.rel (0) target = $region41
    $region40: #{tpu_custom_call.1} parent=1 // pred_region
      %49 = dma.done [#allocation4], 2048
    $region41: #{tpu_custom_call.1} parent=1 // pred_fallthru
      _
    %v51 = vld [vmem:[%s0] sm:$0xff]
    %v52 = vpack.c.bf16 %v51, %v51
    %v53 = vld [vmem:[%s1] sm:$0xff]
    %v54 = vld [vmem:[%s1 + $0x8] sm:$0xff]
    %v55 = vld [vmem:[%s1 + $0x10] sm:$0xff]
    %v56 = vld [vmem:[%s1 + $0x18] sm:$0xff]
    %v57 = vld [vmem:[%s2] sm:$0x3]
    %v59 = vperm.slane %v57, 0
    %v60 = vperm.slane %v57, 1
    %v67 = vunpack.c.l.b16 %v53
    %v68 = vunpack.c.h.b16 %v53
    %v69 = vunpack.c.l.b16 %v54
    %v70 = vunpack.c.h.b16 %v54
    %v71 = vunpack.c.l.b16 %v55
    %v72 = vunpack.c.h.b16 %v55
    %v73 = vunpack.c.l.b16 %v56
    %v74 = vunpack.c.h.b16 %v56
    %v75 = vpack.c.b16 %v69, %v67
    %v76 = vpack.c.b16 %v70, %v68
    %v77 = vpack.c.b16 %v73, %v71
    %v78 = vpack.c.b16 %v74, %v72
    %vm83 = vcmask 261120
    %v85 = vsel %vm83, %v52, 0
    %87 = vmatpush.bf16.msra.mxu0 0
    %88 = vmatpush.bf16.msra.mxu0 0
    %89 = vmatpush.bf16.msra.mxu0 0
    %90 = vmatpush.bf16.msra.mxu0 0
    %91 = vmatpush.bf16.msra.mxu0 0
    %92 = vmatpush.bf16.msra.mxu0 0
    %93 = vmatpush.bf16.msra.mxu0 %v77
    %94 = vmatpush.bf16.msra.mxu0 %v75
    %95 = vmatmul.bf16.gmra.mxu0 %v85
    %v96 = vpop.f32.mrf.mxu0
    %v97 = vadd.f32 %v59, %v96
    %v98 = vpop.f32.mrf.mxu0
    %99 = vdwg.mxu0
    %100 = vmatpush.bf16.msra.mxu0 0
    %101 = vmatpush.bf16.msra.mxu0 0
    %102 = vmatpush.bf16.msra.mxu0 0
    %103 = vmatpush.bf16.msra.mxu0 0
    %104 = vmatpush.bf16.msra.mxu0 0
    %105 = vmatpush.bf16.msra.mxu0 0
    %106 = vmatpush.bf16.msra.mxu0 %v78
    %107 = vmatpush.bf16.msra.mxu0 %v76
    %108 = vmatmul.bf16.gmra.mxu0 %v85
    %v109 = vpop.f32.mrf.mxu0
    %v110 = vadd.f32 %v60, %v109
    %v111 = vpop.f32.mrf.mxu0
    %112 = vdwg.mxu0
    %v113 = vmax.f32 %v97, 0.0
    %v114 = vmax.f32 %v110, 0.0
    %v115 = vpack.c.bf16 %v113, %v113
    %v116 = vpack.c.bf16 %v114, %v114
    %v117 = vld [vmem:[#allocation3] sm:$0xf]
    %v118 = vld [vmem:[#allocation3 + $0x4] sm:$0xf]
    %v119 = vld [vmem:[#allocation3 + $0x8] sm:$0xf]
    %v120 = vld [vmem:[#allocation3 + $0xc] sm:$0xf]
    %v121 = vld [vmem:[#allocation3 + $0x10] sm:$0xf]
    %v122 = vld [vmem:[#allocation3 + $0x14] sm:$0xf]
    %v123 = vld [vmem:[#allocation3 + $0x18] sm:$0xf]
    %v124 = vld [vmem:[#allocation3 + $0x1c] sm:$0xf]
    %v125 = vld [vmem:[#allocation3 + $0x20] sm:$0xf]
    %v126 = vld [vmem:[#allocation3 + $0x24] sm:$0xf]
    %v127 = vld [vmem:[#allocation3 + $0x28] sm:$0xf]
    %v128 = vld [vmem:[#allocation3 + $0x2c] sm:$0xf]
    %v129 = vld [vmem:[#allocation3 + $0x30] sm:$0xf]
    %v130 = vld [vmem:[#allocation3 + $0x34] sm:$0xf]
    %v131 = vld [vmem:[#allocation3 + $0x38] sm:$0xf]
    %v132 = vld [vmem:[#allocation3 + $0x3c] sm:$0xf]
    %v133 = vld [vmem:[#allocation3 + $0x40] sm:$0xf]
    %v134 = vld [vmem:[#allocation3 + $0x44] sm:$0xf]
    %v135 = vld [vmem:[#allocation3 + $0x48] sm:$0xf]
    %v136 = vld [vmem:[#allocation3 + $0x4c] sm:$0xf]
    %v137 = vld [vmem:[#allocation3 + $0x50] sm:$0xf]
    %v138 = vld [vmem:[#allocation3 + $0x54] sm:$0xf]
    %v139 = vld [vmem:[#allocation3 + $0x58] sm:$0xf]
    %v140 = vld [vmem:[#allocation3 + $0x5c] sm:$0xf]
    %v141 = vld [vmem:[#allocation3 + $0x60] sm:$0xf]
    %v142 = vld [vmem:[#allocation3 + $0x64] sm:$0xf]
    %v143 = vld [vmem:[#allocation3 + $0x68] sm:$0xf]
    %v144 = vld [vmem:[#allocation3 + $0x6c] sm:$0xf]
    %v145 = vld [vmem:[#allocation3 + $0x70] sm:$0xf]
    %v146 = vld [vmem:[#allocation3 + $0x74] sm:$0xf]
    %v147 = vld [vmem:[#allocation3 + $0x78] sm:$0xf]
    %v148 = vld [vmem:[#allocation3 + $0x7c] sm:$0xf]
    %v149 = vld [vmem:[%s4] sm:$0x1]
    %v151 = vperm.slane %v149, 0
    %v185 = vunpack.c.l.b16 %v117
    %v186 = vunpack.c.l.b16 %v118
    %v187 = vunpack.c.l.b16 %v119
    %v188 = vunpack.c.l.b16 %v120
    %v189 = vunpack.c.l.b16 %v121
    %v190 = vunpack.c.l.b16 %v122
    %v191 = vunpack.c.l.b16 %v123
    %v192 = vunpack.c.l.b16 %v124
    %v193 = vunpack.c.l.b16 %v125
    %v194 = vunpack.c.l.b16 %v126
    %v195 = vunpack.c.l.b16 %v127
    %v196 = vunpack.c.l.b16 %v128
    %v197 = vunpack.c.l.b16 %v129
    %v198 = vunpack.c.l.b16 %v130
    %v199 = vunpack.c.l.b16 %v131
    %v200 = vunpack.c.l.b16 %v132
    %v201 = vunpack.c.l.b16 %v133
    %v202 = vunpack.c.l.b16 %v134
    %v203 = vunpack.c.l.b16 %v135
    %v204 = vunpack.c.l.b16 %v136
    %v205 = vunpack.c.l.b16 %v137
    %v206 = vunpack.c.l.b16 %v138
    %v207 = vunpack.c.l.b16 %v139
    %v208 = vunpack.c.l.b16 %v140
    %v209 = vunpack.c.l.b16 %v141
    %v210 = vunpack.c.l.b16 %v142
    %v211 = vunpack.c.l.b16 %v143
    %v212 = vunpack.c.l.b16 %v144
    %v213 = vunpack.c.l.b16 %v145
    %v214 = vunpack.c.l.b16 %v146
    %v215 = vunpack.c.l.b16 %v147
    %v216 = vunpack.c.l.b16 %v148
    %v217 = vpack.c.b16 %v186, %v185
    %v218 = vpack.c.b16 %v188, %v187
    %v219 = vpack.c.b16 %v190, %v189
    %v220 = vpack.c.b16 %v192, %v191
    %v221 = vpack.c.b16 %v194, %v193
    %v222 = vpack.c.b16 %v196, %v195
    %v223 = vpack.c.b16 %v198, %v197
    %v224 = vpack.c.b16 %v200, %v199
    %v225 = vpack.c.b16 %v202, %v201
    %v226 = vpack.c.b16 %v204, %v203
    %v227 = vpack.c.b16 %v206, %v205
    %v228 = vpack.c.b16 %v208, %v207
    %v229 = vpack.c.b16 %v210, %v209
    %v230 = vpack.c.b16 %v212, %v211
    %v231 = vpack.c.b16 %v214, %v213
    %v232 = vpack.c.b16 %v216, %v215
    %249 = vmatpush.bf16.msra.mxu0 %v224
    %250 = vmatpush.bf16.msra.mxu0 %v223
    %251 = vmatpush.bf16.msra.mxu0 %v222
    %252 = vmatpush.bf16.msra.mxu0 %v221
    %253 = vmatpush.bf16.msra.mxu0 %v220
    %254 = vmatpush.bf16.msra.mxu0 %v219
    %255 = vmatpush.bf16.msra.mxu0 %v218
    %256 = vmatpush.bf16.msra.mxu0 %v217
    %257 = vmatmul.bf16.gmra.mxu0 %v115
    %v258 = vpop.f32.mrf.mxu0
    %v259 = vadd.f32 %v151, %v258
    %v260 = vpop.f32.mrf.mxu0
    %261 = vdwg.mxu0
    %262 = vmatpush.bf16.msra.mxu0 %v232
    %263 = vmatpush.bf16.msra.mxu0 %v231
    %264 = vmatpush.bf16.msra.mxu0 %v230
    %265 = vmatpush.bf16.msra.mxu0 %v229
    %266 = vmatpush.bf16.msra.mxu0 %v228
    %267 = vmatpush.bf16.msra.mxu0 %v227
    %268 = vmatpush.bf16.msra.mxu0 %v226
    %269 = vmatpush.bf16.msra.mxu0 %v225
    %270 = vmatmul.bf16.gmra.mxu0 %v116
    %v271 = vpop.f32.mrf.mxu0
    %v272 = vadd.f32 %v259, %v271
    %v273 = vpop.f32.mrf.mxu0
    %274 = vdwg.mxu0
    %v275 = vmax.f32 %v272, 0.0
    %v276 = vpack.c.bf16 %v275, %v275
    %v277 = vld [vmem:[%s5] sm:$0xf]
    %v278 = vld [vmem:[%s5 + $0x4] sm:$0xf]
    %v279 = vld [vmem:[%s5 + $0x8] sm:$0xf]
    %v280 = vld [vmem:[%s5 + $0xc] sm:$0xf]
    %v281 = vld [vmem:[%s5 + $0x10] sm:$0xf]
    %v282 = vld [vmem:[%s5 + $0x14] sm:$0xf]
    %v283 = vld [vmem:[%s5 + $0x18] sm:$0xf]
    %v284 = vld [vmem:[%s5 + $0x1c] sm:$0xf]
    %v285 = vld [vmem:[%s5 + $0x20] sm:$0xf]
    %v286 = vld [vmem:[%s5 + $0x24] sm:$0xf]
    %v287 = vld [vmem:[%s5 + $0x28] sm:$0xf]
    %v288 = vld [vmem:[%s5 + $0x2c] sm:$0xf]
    %v289 = vld [vmem:[%s5 + $0x30] sm:$0xf]
    %v290 = vld [vmem:[%s5 + $0x34] sm:$0xf]
    %v291 = vld [vmem:[%s5 + $0x38] sm:$0xf]
    %v292 = vld [vmem:[%s5 + $0x3c] sm:$0xf]
    %v293 = vld [vmem:[%s6] sm:$0x1]
    %v295 = vperm.slane %v293, 0
    %v313 = vunpack.c.l.b16 %v277
    %v314 = vunpack.c.l.b16 %v278
    %v315 = vunpack.c.l.b16 %v279
    %v316 = vunpack.c.l.b16 %v280
    %v317 = vunpack.c.l.b16 %v281
    %v318 = vunpack.c.l.b16 %v282
    %v319 = vunpack.c.l.b16 %v283
    %v320 = vunpack.c.l.b16 %v284
    %v321 = vunpack.c.l.b16 %v285
    %v322 = vunpack.c.l.b16 %v286
    %v323 = vunpack.c.l.b16 %v287
    %v324 = vunpack.c.l.b16 %v288
    %v325 = vunpack.c.l.b16 %v289
    %v326 = vunpack.c.l.b16 %v290
    %v327 = vunpack.c.l.b16 %v291
    %v328 = vunpack.c.l.b16 %v292
    %v329 = vpack.c.b16 %v314, %v313
    %v330 = vpack.c.b16 %v316, %v315
    %v331 = vpack.c.b16 %v318, %v317
    %v332 = vpack.c.b16 %v320, %v319
    %v333 = vpack.c.b16 %v322, %v321
    %v334 = vpack.c.b16 %v324, %v323
    %v335 = vpack.c.b16 %v326, %v325
    %v336 = vpack.c.b16 %v328, %v327
    %345 = vmatpush.bf16.msra.mxu0 %v336
    %346 = vmatpush.bf16.msra.mxu0 %v335
    %347 = vmatpush.bf16.msra.mxu0 %v334
    %348 = vmatpush.bf16.msra.mxu0 %v333
    %349 = vmatpush.bf16.msra.mxu0 %v332
    %350 = vmatpush.bf16.msra.mxu0 %v331
    %351 = vmatpush.bf16.msra.mxu0 %v330
    %352 = vmatpush.bf16.msra.mxu0 %v329
    %353 = vmatmul.bf16.gmra.mxu0 %v276
    %v354 = vpop.f32.mrf.mxu0
    %v355 = vadd.f32 %v295, %v354
    %v356 = vpop.f32.mrf.mxu0
    %357 = vdwg.mxu0
    %v358 = vmax.f32 %v355, 0.0
    %v359 = vld [vmem:[%s7] sm:$0x1]
    %v361 = vperm.slane %v359, 0
    %v363 = vmul.f32 %v358, %v361
    %vm364 = vcmask 523264
    %v365 = vsel %vm364, %v363, 0.0
    %366 = vadd.xlane.f32.xlu0 %v365
    %v367 = vpop.xlane.xlu0 %366
    %v368 = vld [vmem:[#allocation2] sm:$0x1]
    %v370 = vperm.slane %v368, 0
    %v372 = vadd.f32 %v367, %v370
    %vm373 = vcmask 7168
    %374 = vst.msk [vmem:[%s9] sm:$0xff] %vm373, %v372
    // Predicated region
    $region42: #{tpu_custom_call.1} parent=1 // pred_check
      _
    $region43: #{tpu_custom_call.1} parent=1 // pred_check_branch
      %376 = sbr.rel (0) target = $region45
    $region44: #{tpu_custom_call.1} parent=1 // pred_region
      _
    $region45: #{tpu_custom_call.1} parent=1 // pred_fallthru
      _
    // Predicated region
    $region46: #{tpu_custom_call.1} parent=1 // pred_check
      _
    $region47: #{tpu_custom_call.1} parent=1 // pred_check_branch
      %378 = sbr.rel (0) target = $region49
    $region48: #{tpu_custom_call.1} parent=1 // pred_region
      _
    $region49: #{tpu_custom_call.1} parent=1 // pred_fallthru
      _
    %379 = vsyncpa [#allocation4], 1

</llo_original>
